<compile_context>
chip_gen: v5e
topology: v5e:2x2
jax: 0.10.0
libtpu: 0.0.40
codegen_flags: <defaults>
</compile_context>

<pallas_src>
import jax
import jax.numpy as jnp
from jax import lax
from jax.experimental import pallas as pl
from jax.experimental.pallas import tpu as pltpu  # noqa: F401  (TPU backend)

# ---------------------------------------------------------------------------
# Model hyper-parameters (small, mutually consistent).
# ---------------------------------------------------------------------------
B = 2
COMP_SIZE = 8
ALPHABET = list(range(COMP_SIZE))
N_ELEMENTS = max(ALPHABET) + 1

COMP_HIDDEN = 32            # comp_hidden_channels
SG_EMB = 16                 # sg_emb_size
LAT_SIZE = 8                # lat_size
LAT_HIDDEN = 16             # lat_hidden_channels
CONV_HIDDEN = 32            # conv["hidden_channels"]
HEADS = 1                   # conv["type"] == "gcn"
PRED_HIDDEN = 32            # pred_hidden_channels

# pred_inp_size = conv_hidden * heads + sg_emb + lat_hidden
PRED_INP = CONV_HIDDEN * HEADS + SG_EMB + LAT_HIDDEN          # = 64
# add_to_node consistency requires COMP_HIDDEN + LAT_HIDDEN + SG_EMB == PRED_INP
assert COMP_HIDDEN + LAT_HIDDEN + SG_EMB == PRED_INP

# PhysEmbedding sub-sizes (z / period / group / properties projection)
Z_EMB, PERIOD_EMB, GROUP_EMB, PROPS_PROJ = 16, 8, 8, 16
PHYS_DIM = Z_EMB + PERIOD_EMB + GROUP_EMB + PROPS_PROJ        # = 48

N_SG = 231                  # nn.Embedding(231, sg_emb_size)
OUT_LANES = 128             # lane-dense output / weight-slab width

DATA_COLS = COMP_SIZE + LAT_SIZE + SG_EMB                     # = 32
XBAR = PRED_INP                                               # = 64

# Weight-slab static row offsets (all 8-sublane aligned).
R_WA = 0      # (32, :64)  stage-1 weight  [phys_M | lat_W | I_sg] (block-diag)
R_BX = 32     # ( 1, :64)  xbar bias       [phys_b | lat_b | 0]
R_WB = 40     # (64, :64)  stage-2 weight  [gcn_W @ pred_w1_conv | Q_sg_lat]
R_BH = 104    # ( 1, :64)  [pred_b1 | gcn_b @ pred_w1_conv]
R_WC = 112    # (32, :128) pred_w2 padded to 128 lanes (column 0 real)
R_BC = 144    # ( 1, :128) pred_b2 padded (column 0 real)
SLAB_ROWS = 152


# ---------------------------------------------------------------------------
# Pallas plumbing
# ---------------------------------------------------------------------------
def _full_spec(shape):
    # whole-array block (no grid -> single kernel invocation)
    return pl.BlockSpec(shape, lambda *_: (0,) * len(shape))


# ---------------------------------------------------------------------------
# The single fused kernel: 2 inputs (data slab + weight slab), 3 matmuls.
# ---------------------------------------------------------------------------
def _fused_forward_kernel(data_ref, w_ref, out_ref):
    f32 = jnp.float32
    data = data_ref[...]                                   # (B, 32) = [counts | lat_in | sg_x]
    bsz = data.shape[0]

    # Per-graph atom count c and batch max N_max.
    # TODO(synk): the reference divides by zero on zero-atom graphs; clamp keeps it finite.
    counts = data[:, 0:COMP_SIZE]
    c = jnp.maximum(jnp.sum(counts, axis=1, keepdims=True), 1.0)      # (B, 1)
    n_max = jnp.max(c, axis=0, keepdims=True)                         # (1, 1)

    # ---- stage 1 (one MXU pass): u = [counts@phys_M | lat_in@lat_W | sg_x] --
    u = jnp.dot(data, w_ref[R_WA:R_WA + DATA_COLS, 0:XBAR],
                preferred_element_type=f32)                           # (B, 64)
    # xbar = per-graph mean node feature [mean_phys | lat_x | sg_x]
    col = lax.broadcasted_iota(jnp.int32, (bsz, XBAR), 1)
    xbar = u * jnp.where(col < COMP_HIDDEN, 1.0 / c, 1.0) \
        + w_ref[R_BX:R_BX + 1, 0:XBAR]

    # ---- stage 2 (one MXU pass): analytic GNNBlock, folded through pred W1 --
    #   adj = all-ones over real nodes (+ self loops) => every real row is the
    #   mean node feature xbar; readout = c*real2 + (N_max-c)*pad2, and
    #   conv_out @ pred_w1_conv = c*(xbar @ gcn_W @ pred_w1_conv)
    #                             + N_max*(gcn_b @ pred_w1_conv).
    #   The sg/lat part of the pred-head first Linear is the Q block.
    v = jnp.dot(xbar, w_ref[R_WB:R_WB + XBAR, 0:2 * PRED_HIDDEN],
                preferred_element_type=f32)                           # (B, 64)
    bh = w_ref[R_BH:R_BH + 1, 0:2 * PRED_HIDDEN]                      # (1, 64)
    h = (c * v[:, 0:PRED_HIDDEN] + v[:, PRED_HIDDEN:2 * PRED_HIDDEN]
         + bh[:, 0:PRED_HIDDEN] + n_max * bh[:, PRED_HIDDEN:2 * PRED_HIDDEN])
    h = jnp.where(h >= 0, h, 0.2 * h)                                 # LeakyReLU(0.2); Dropout(eval)=id

    # ---- stage 3 (one MXU pass): final Linear, lane-dense store -------------
    out_ref[...] = (jnp.dot(h, w_ref[R_WC:R_WC + PRED_HIDDEN, :],
                            preferred_element_type=f32)
                    + w_ref[R_BC:R_BC + 1, :])


# ---------------------------------------------------------------------------
# Parameters: deterministic synthetic init; BatchNorm + adjacent Linears folded
# at init time; everything packed into one lane-dense (152, 128) slab.
# ---------------------------------------------------------------------------
def init_params(key):
    keys = jax.random.split(key, 12)

    def linear_init(k, fan_in, fan_out):
        # nn.Linear default bounds; weight stored transposed as (in, out)
        bound = fan_in ** -0.5
        kw, kb = jax.random.split(k)
        w = jax.random.uniform(kw, (fan_in, fan_out), jnp.float32, -bound, bound)
        b = jax.random.uniform(kb, (1, fan_out), jnp.float32, -bound, bound)
        return w, b

    def bn_fold(k, n):
        # Fresh nn.BatchNorm1d in eval mode: running_mean=0, running_var=1, eps=1e-5.
        kg, kb = jax.random.split(k)
        gamma = 1.0 + 0.1 * jax.random.normal(kg, (1, n), jnp.float32)
        beta = 0.1 * jax.random.normal(kb, (1, n), jnp.float32)
        running_mean = jnp.zeros((1, n), jnp.float32)
        running_var = jnp.ones((1, n), jnp.float32)
        scale = gamma * lax.rsqrt(running_var + 1e-5)
        shift = beta - running_mean * scale
        return scale, shift

    # --- raw module parameters ----------------------------------------------
    # nn.Embedding(231, sg_emb_size): stays OUTSIDE the kernel (wrapper gather).
    sg_emb = 0.1 * jax.random.normal(keys[0], (N_SG, SG_EMB), jnp.float32)

    # lat_emb_mlp = (Linear+BN+LeakyReLU(True)) x 2; LeakyReLU(True) => slope 1.0 => identity.
    # TODO(synk): if the reference author intended inplace=True (slope 0.01), these folds are invalid.
    w1, b1 = linear_init(keys[1], LAT_SIZE, LAT_HIDDEN)
    s, t = bn_fold(keys[2], LAT_HIDDEN); w1, b1 = w1 * s, b1 * s + t
    w2, b2 = linear_init(keys[3], LAT_HIDDEN, LAT_HIDDEN)
    s, t = bn_fold(keys[4], LAT_HIDDEN); w2, b2 = w2 * s, b2 * s + t
    lat_W = w1 @ w2                                   # (8, 16)
    lat_b = b1 @ w2 + b2                              # (1, 16)

    # TODO(synk): PhysEmbedding source not provided; approximated as an element
    # embedding table (z/period/group/properties) + final linear projection.
    phys_table = 0.1 * jax.random.normal(keys[5], (N_ELEMENTS, PHYS_DIM), jnp.float32)
    phys_w, phys_b = linear_init(keys[6], PHYS_DIM, COMP_HIDDEN)
    phys_M = phys_table @ phys_w                      # (8, 32)

    # GNNBlock: DenseGCNConv(64->32), DenseGCNConv(32->32); lin bias=False,
    # conv bias zero-init (PyG); identity activation between -> fold W1@W2.
    gcn_w1, _ = linear_init(keys[7], PRED_INP, CONV_HIDDEN)
    gcn_b1 = jnp.zeros((1, CONV_HIDDEN), jnp.float32)
    gcn_w2, _ = linear_init(keys[8], CONV_HIDDEN, CONV_HIDDEN)
    gcn_b2 = jnp.zeros((1, CONV_HIDDEN), jnp.float32)
    gcn_W = gcn_w1 @ gcn_w2                           # (64, 32)
    gcn_b = gcn_b1 @ gcn_w2 + gcn_b2                  # (1, 32)

    # prediction head: Linear+BN (folded) -> LeakyReLU(0.2) -> Dropout(eval) -> Linear(.,1)
    pw1, pb1 = linear_init(keys[9], PRED_INP, PRED_HIDDEN)
    s, t = bn_fold(keys[10], PRED_HIDDEN); pw1, pb1 = pw1 * s, pb1 * s + t
    pw2, pb2 = linear_init(keys[11], PRED_HIDDEN, 1)

    # --- fold + pack into one lane-dense weight slab --------------------------
    # stage-1: data(B,32)=[counts|lat_in|sg_x] @ W_A = [counts@phys_M | lat_in@lat_W | sg_x]
    W_A = jnp.zeros((DATA_COLS, XBAR), jnp.float32)
    W_A = W_A.at[0:COMP_SIZE, 0:COMP_HIDDEN].set(phys_M)
    W_A = W_A.at[COMP_SIZE:COMP_SIZE + LAT_SIZE,
                 COMP_HIDDEN:COMP_HIDDEN + LAT_HIDDEN].set(lat_W)
    W_A = W_A.at[COMP_SIZE + LAT_SIZE:DATA_COLS,
                 COMP_HIDDEN + LAT_HIDDEN:XBAR].set(jnp.eye(SG_EMB, dtype=jnp.float32))
    bias_x = jnp.concatenate([phys_b, lat_b, jnp.zeros((1, SG_EMB), jnp.float32)], axis=1)

    # stage-2: xbar layout is [mean_phys(0:32) | lat_x(32:48) | sg_x(48:64)];
    # pred-head feature is [conv_out(0:32) | sg_x(32:48) | lat_x(48:64)].
    pw1_conv = pw1[0:CONV_HIDDEN, :]
    pw1_sg = pw1[CONV_HIDDEN:CONV_HIDDEN + SG_EMB, :]
    pw1_lat = pw1[CONV_HIDDEN + SG_EMB:PRED_INP, :]
    Wgp = gcn_W @ pw1_conv                            # (64, 32), gets *c at runtime
    Q = jnp.zeros((XBAR, PRED_HIDDEN), jnp.float32)
    Q = Q.at[COMP_HIDDEN:COMP_HIDDEN + LAT_HIDDEN, :].set(pw1_lat)   # lat cols of xbar
    Q = Q.at[COMP_HIDDEN + LAT_HIDDEN:XBAR, :].set(pw1_sg)           # sg  cols of xbar
    W_B = jnp.concatenate([Wgp, Q], axis=1)           # (64, 64)
    bh = jnp.concatenate([pb1, gcn_b @ pw1_conv], axis=1)            # (1, 64); 2nd half *N_max

    # stage-3: lane-dense final Linear (real data in column 0)
    W_C = jnp.zeros((PRED_HIDDEN, OUT_LANES), jnp.float32).at[:, 0:1].set(pw2)
    b_C = jnp.zeros((1, OUT_LANES), jnp.float32).at[:, 0:1].set(pb2)

    slab = jnp.zeros((SLAB_ROWS, OUT_LANES), jnp.float32)
    slab = slab.at[R_WA:R_WA + DATA_COLS, 0:XBAR].set(W_A)
    slab = slab.at[R_BX:R_BX + 1, 0:XBAR].set(bias_x)
    slab = slab.at[R_WB:R_WB + XBAR, 0:2 * PRED_HIDDEN].set(W_B)
    slab = slab.at[R_BH:R_BH + 1, 0:2 * PRED_HIDDEN].set(bh)
    slab = slab.at[R_WC:R_WC + PRED_HIDDEN, :].set(W_C)
    slab = slab.at[R_BC:R_BC + 1, :].set(b_C)

    return {"sg_emb": sg_emb, "w_slab": slab}


# ---------------------------------------------------------------------------
# Forward pass: single fused pallas_call with 2 inputs, jitted end-to-end.
# ---------------------------------------------------------------------------
@jax.jit
def proxy_graph_model_forward(params, x0, x1, x2):
    """x = [composition counts (B, comp_size), space group (B, 1), lattice (B, lat_size)]"""
    bsz = x0.shape[0]
    counts = x0.astype(jnp.float32)
    lat_in = x2.astype(jnp.float32)
    sg_idx = x1.astype(jnp.int32).reshape(bsz)
    sg_x = jnp.take(params["sg_emb"], sg_idx, axis=0)            # (B, 16) gather outside kernel
    data = jnp.concatenate([counts, lat_in, sg_x], axis=-1)      # (B, 32) single data DMA

    out_pad = pl.pallas_call(
        _fused_forward_kernel,
        out_shape=jax.ShapeDtypeStruct((bsz, OUT_LANES), jnp.float32),
        in_specs=[_full_spec((bsz, DATA_COLS)),
                  _full_spec((SLAB_ROWS, OUT_LANES))],
        out_specs=_full_spec((bsz, OUT_LANES)),
    )(data, params["w_slab"])
    # TODO(synk): for large batches add a batch grid with
    # dimension_semantics=("parallel",) to use v7x's second TensorCore;
    # unnecessary at B=2.
    return out_pad[:, :1]                                        # (B, 1)


# ---------------------------------------------------------------------------
if __name__ == "__main__":
    key = jax.random.PRNGKey(0)
    kp, k0, k1, k2 = jax.random.split(key, 4)

    params = init_params(kp)

    # x = [composition counts, space group index, lattice parameters]
    x0 = jax.random.randint(k0, (B, COMP_SIZE), 0, 4).astype(jnp.float32)
    x0 = x0.at[:, 0].set(jnp.maximum(x0[:, 0], 1.0))    # ensure every graph has >=1 atom
    x1 = jax.random.randint(k1, (B, 1), 1, 231)
    x2 = jax.random.normal(k2, (B, LAT_SIZE), jnp.float32)

    out = proxy_graph_model_forward(params, x0, x1, x2)
    out = jax.block_until_ready(out)
    assert out.shape == (B, 1) and out.dtype == jnp.float32
    print("KERNEL_OK")
</pallas_src>

<mosaic_0001>
module attributes {stable_mosaic.version = 11 : i64} {
  func.func @_fused_forward_kernel(%arg0: memref<2x32xf32, #tpu.memory_space<vmem>>, %arg1: memref<152x128xf32, #tpu.memory_space<vmem>>, %arg2: memref<2x128xf32, #tpu.memory_space<vmem>>) attributes {dimension_semantics = [], scalar_prefetch = 0 : i64, scratch_operands = 0 : i64, tpu.core_type = #tpu.core_type<tc>} {
    %c0 = arith.constant 0 : index
    %c0_0 = arith.constant 0 : index
    %0 = vector.load %arg0[%c0, %c0_0] : memref<2x32xf32, #tpu.memory_space<vmem>>, vector<2x32xf32>
    %1 = vector.extract_strided_slice %0 {offsets = [0, 0], sizes = [2, 8], strides = [1, 1]} : vector<2x32xf32> to vector<2x8xf32>
    %cst = arith.constant dense<0.000000e+00> : vector<2xf32>
    %2 = vector.multi_reduction <add>, %1, %cst [1] : vector<2x8xf32> to vector<2xf32>
    %3 = vector.shape_cast %2 : vector<2xf32> to vector<2x1xf32>
    %cst_1 = arith.constant 1.000000e+00 : f32
    %4 = vector.broadcast %cst_1 : f32 to vector<2x1xf32>
    %5 = arith.maximumf %3, %4 : vector<2x1xf32>
    %cst_2 = arith.constant dense<0xFF800000> : vector<1xf32>
    %6 = vector.multi_reduction <maximumf>, %5, %cst_2 [0] : vector<2x1xf32> to vector<1xf32>
    %7 = vector.shape_cast %6 : vector<1xf32> to vector<1x1xf32>
    %c0_3 = arith.constant 0 : index
    %c0_4 = arith.constant 0 : index
    %8 = vector.load %arg1[%c0_3, %c0_4] : memref<152x128xf32, #tpu.memory_space<vmem>>, vector<32x64xf32>
    %cst_5 = arith.constant dense<0.000000e+00> : vector<2x64xf32>
    %9 = tpu.matmul %0, %8, %cst_5 {dimension_numbers = #tpu.dot_dimension_numbers<[1], [0], [0], [1], [0, 0, 1, 1], [], []>} : vector<2x32xf32>, vector<32x64xf32>, vector<2x64xf32> -> vector<2x64xf32>
    %10 = tpu.iota {dimensions = array<i32: 1>} : vector<2x64xi32>
    %c32_i32 = arith.constant 32 : i32
    %11 = vector.broadcast %c32_i32 : i32 to vector<2x64xi32>
    %12 = arith.cmpi slt, %10, %11 : vector<2x64xi32>
    %cst_6 = arith.constant 1.000000e+00 : f32
    %13 = vector.broadcast %cst_6 : f32 to vector<2x1xf32>
    %14 = arith.divf %13, %5 : vector<2x1xf32>
    %cst_7 = arith.constant 1.000000e+00 : f32
    %15 = vector.shape_cast %14 : vector<2x1xf32> to vector<2x1xf32>
    %16 = vector.broadcast %15 : vector<2x1xf32> to vector<2x64xf32>
    %17 = vector.broadcast %cst_7 : f32 to vector<2x64xf32>
    %18 = arith.select %12, %16, %17 : vector<2x64xi1>, vector<2x64xf32>
    %19 = arith.mulf %9, %18 : vector<2x64xf32>
    %c32 = arith.constant 32 : index
    %c0_8 = arith.constant 0 : index
    %20 = vector.load %arg1[%c32, %c0_8] : memref<152x128xf32, #tpu.memory_space<vmem>>, vector<1x64xf32>
    %21 = vector.broadcast %20 : vector<1x64xf32> to vector<2x64xf32>
    %22 = arith.addf %19, %21 : vector<2x64xf32>
    %c40 = arith.constant 40 : index
    %c0_9 = arith.constant 0 : index
    %23 = vector.load %arg1[%c40, %c0_9] : memref<152x128xf32, #tpu.memory_space<vmem>>, vector<64x64xf32>
    %cst_10 = arith.constant dense<0.000000e+00> : vector<2x64xf32>
    %24 = tpu.matmul %22, %23, %cst_10 {dimension_numbers = #tpu.dot_dimension_numbers<[1], [0], [0], [1], [0, 0, 1, 1], [], []>} : vector<2x64xf32>, vector<64x64xf32>, vector<2x64xf32> -> vector<2x64xf32>
    %c104 = arith.constant 104 : index
    %c0_11 = arith.constant 0 : index
    %25 = vector.load %arg1[%c104, %c0_11] : memref<152x128xf32, #tpu.memory_space<vmem>>, vector<1x64xf32>
    %26 = vector.extract_strided_slice %24 {offsets = [0, 0], sizes = [2, 32], strides = [1, 1]} : vector<2x64xf32> to vector<2x32xf32>
    %27 = vector.broadcast %5 : vector<2x1xf32> to vector<2x32xf32>
    %28 = arith.mulf %27, %26 : vector<2x32xf32>
    %29 = vector.extract_strided_slice %24 {offsets = [0, 32], sizes = [2, 32], strides = [1, 1]} : vector<2x64xf32> to vector<2x32xf32>
    %30 = arith.addf %28, %29 : vector<2x32xf32>
    %31 = vector.extract_strided_slice %25 {offsets = [0, 0], sizes = [1, 32], strides = [1, 1]} : vector<1x64xf32> to vector<1x32xf32>
    %32 = vector.broadcast %31 : vector<1x32xf32> to vector<2x32xf32>
    %33 = arith.addf %30, %32 : vector<2x32xf32>
    %34 = vector.extract_strided_slice %25 {offsets = [0, 32], sizes = [1, 32], strides = [1, 1]} : vector<1x64xf32> to vector<1x32xf32>
    %35 = vector.broadcast %7 : vector<1x1xf32> to vector<1x32xf32>
    %36 = arith.mulf %35, %34 : vector<1x32xf32>
    %37 = vector.broadcast %36 : vector<1x32xf32> to vector<2x32xf32>
    %38 = arith.addf %33, %37 : vector<2x32xf32>
    %cst_12 = arith.constant 0.000000e+00 : f32
    %39 = vector.broadcast %cst_12 : f32 to vector<2x32xf32>
    %40 = arith.cmpf oge, %38, %39 : vector<2x32xf32>
    %cst_13 = arith.constant 2.000000e-01 : f32
    %41 = vector.broadcast %cst_13 : f32 to vector<2x32xf32>
    %42 = arith.mulf %41, %38 : vector<2x32xf32>
    %43 = arith.select %40, %38, %42 : vector<2x32xi1>, vector<2x32xf32>
    %c112 = arith.constant 112 : index
    %c0_14 = arith.constant 0 : index
    %44 = vector.load %arg1[%c112, %c0_14] : memref<152x128xf32, #tpu.memory_space<vmem>>, vector<32x128xf32>
    %cst_15 = arith.constant dense<0.000000e+00> : vector<2x128xf32>
    %45 = tpu.matmul %43, %44, %cst_15 {dimension_numbers = #tpu.dot_dimension_numbers<[1], [0], [0], [1], [0, 0, 1, 1], [], []>} : vector<2x32xf32>, vector<32x128xf32>, vector<2x128xf32> -> vector<2x128xf32>
    %c144 = arith.constant 144 : index
    %c0_16 = arith.constant 0 : index
    %46 = vector.load %arg1[%c144, %c0_16] : memref<152x128xf32, #tpu.memory_space<vmem>>, vector<1x128xf32>
    %47 = vector.broadcast %46 : vector<1x128xf32> to vector<2x128xf32>
    %48 = arith.addf %45, %47 : vector<2x128xf32>
    %c0_17 = arith.constant 0 : index
    %c0_18 = arith.constant 0 : index
    %49 = vector.load %arg2[%c0_17, %c0_18] : memref<2x128xf32, #tpu.memory_space<vmem>>, vector<2x128xf32>
    tpu.vector_store %arg2[%c0_17, %c0_18], %48 {strides = array<i32>} : memref<2x128xf32, #tpu.memory_space<vmem>>, vector<2x128xf32>,
    return
  }
}

</mosaic_0001>

<llo_original>
// kernel: proxy_graph_model_forward.1
$region0: #{proxy_graph_model_forward.1}
  #allocation0 [shape = 'u32[]', space=smem, size = 0x4, offset = 0x4, fixed_abs, tag = 'smem constant byte address 0x4 - core index']
  #allocation1 [shape = 'u32[72,128]{1,0:T(1,128)}', space=vmem, size = 0x9000, scoped, tag = 'internal scratch']
  %s0 = inlined_call_operand.vmem [shape: f32[2,32], index: 0, kind: input, shape index: {}]
  %s1 = inlined_call_operand.vmem [shape: f32[152,128], index: 1, kind: input, shape index: {}]
  %s2 = inlined_call_operand.vmem [shape: f32[2,128], index: 2, kind: output, shape index: {}]
  %s3 = sld [smem:[#allocation0]]
  $region18: #{proxy_graph_model_forward.1} parent=0
    _
  %s5 = ssub.s32 1, %s3
  %s6 = scalar_select 0, %s5, %s3
  // Predicated region
  $region2: #{proxy_graph_model_forward.1} parent=0 // pred_check
    _
  $region3: #{proxy_graph_model_forward.1} parent=0 // pred_check_branch
    %8 = sbr.rel (0) target = $region5
  $region4: #{proxy_graph_model_forward.1} parent=0 // pred_region
    _
  $region5: #{proxy_graph_model_forward.1} parent=0 // pred_fallthru
    _
  // Predicated region
  $region6: #{proxy_graph_model_forward.1} parent=0 // pred_check
    _
  $region7: #{proxy_graph_model_forward.1} parent=0 // pred_check_branch
    %10 = sbr.rel (0) target = $region9
  $region8: #{proxy_graph_model_forward.1} parent=0 // pred_region
    _
  $region9: #{proxy_graph_model_forward.1} parent=0 // pred_fallthru
    _
  %v11 = vld [vmem:[%s0] sm:$0x3]
  %vm12 = vcmask 58368
  %v13 = vsel %vm12, %v11, 0.0
  %14 = vadd.xlane.f32.xlu0 %v13
  %v15 = vpop.xlane.xlu0 %14
  %v16 = vmax.f32 %v15, 1.0
  %vm17 = vcmask 1041408
  %v18 = vsel %vm17, %v16, -inf
  %v19 = vrot.slane %v18, 4
  %v20 = vmax.f32 %v18, %v19
  %v21 = vrot.slane %v20, 2
  %v22 = vmax.f32 %v20, %v21
  %v23 = vrot.slane %v22, 1
  %v24 = vmax.f32 %v22, %v23
  %v25 = vld [vmem:[%s1] sm:$0xff]
  %v26 = vld [vmem:[%s1 + $0x8] sm:$0xff]
  %v27 = vld [vmem:[%s1 + $0x10] sm:$0xff]
  %v28 = vld [vmem:[%s1 + $0x18] sm:$0xff]
  %vm29 = vcmask 261120
  %v31 = vsel %vm29, %v11, 0
  %33 = vmatpush.msra.mxu0 0.0
  %34 = vmatpush.msra.mxu0 0.0
  %35 = vmatpush.msra.mxu0 0.0
  %36 = vmatpush.msra.mxu0 0.0
  %37 = vmatpush.msra.mxu0 0.0
  %38 = vmatpush.msra.mxu0 0.0
  %39 = vmatpush.msra.mxu0 0.0
  %40 = vmatpush.msra.mxu0 0.0
  %41 = vmatpush.msra.mxu0 0.0
  %42 = vmatpush.msra.mxu0 0.0
  %43 = vmatpush.msra.mxu0 0.0
  %44 = vmatpush.msra.mxu0 0.0
  %45 = vmatpush.msra.mxu0 %v28
  %46 = vmatpush.msra.mxu0 %v27
  %47 = vmatpush.msra.mxu0 %v26
  %48 = vmatpush.msra.mxu0 %v25
  %49 = vmatmul.f32.gmra.mxu0 %v31
  %v50 = vpop.f32.mrf.mxu0
  %v51 = vadd.f32 0.0, %v50
  %52 = vdwg.mxu0
  %v53 = vlaneseq
  %v54 = vand.u32 %v53, 127
  %vm55 = vcmp.lt.s32.totalorder %v54, 32
  %v56 = vrcp.pop %v16
  %v57 = vmul.f32 %v16, %v56
  %v58 = vsub.f32 1.0, %v57
  %v59 = vmul.f32 %v56, %v58
  %v60 = vadd.f32 %v56, %v59
  %vm61 = vweird.f32 %v16
  %vm62 = vweird.f32 %v56
  %vm63 = vmor %vm61, %vm62
  %v64 = vsel %vm63, %v56, %v60
  %v65 = vand.u32 2147483647, %v16
  %vm66 = vcmp.eq.f32.partialorder %v65, 8.507059e+37
  %v67 = vand.u32 %v16, 2147483648
  %v68 = vor.u32 1.1754944e-38, %v67
  %v69 = vsel %vm66, %v68, %v64
  %v70 = vmul.f32 1.0, %v69
  %v71 = vsel %vm55, %v70, 1.0
  %v72 = vmul.f32 %v51, %v71
  %v73 = vld [vmem:[%s1 + $0x20] sm:$0x1]
  %v74 = vperm.slane %v73, 0
  %v75 = vadd.f32 %v72, %v74
  %v76 = vld [vmem:[%s1 + $0x28] sm:$0xff]
  %v77 = vld [vmem:[%s1 + $0x30] sm:$0xff]
  %v78 = vld [vmem:[%s1 + $0x38] sm:$0xff]
  %v79 = vld [vmem:[%s1 + $0x40] sm:$0xff]
  %v80 = vld [vmem:[%s1 + $0x48] sm:$0xff]
  %v81 = vld [vmem:[%s1 + $0x50] sm:$0xff]
  %v82 = vld [vmem:[%s1 + $0x58] sm:$0xff]
  %v83 = vld [vmem:[%s1 + $0x60] sm:$0xff]
  %vm84 = vcmask 523264
  %v86 = vsel %vm84, %v75, 0
  %88 = vmatpush.msra.mxu0 0.0
  %89 = vmatpush.msra.mxu0 0.0
  %90 = vmatpush.msra.mxu0 0.0
  %91 = vmatpush.msra.mxu0 0.0
  %92 = vmatpush.msra.mxu0 0.0
  %93 = vmatpush.msra.mxu0 0.0
  %94 = vmatpush.msra.mxu0 0.0
  %95 = vmatpush.msra.mxu0 0.0
  %96 = vmatpush.msra.mxu0 %v83
  %97 = vmatpush.msra.mxu0 %v82
  %98 = vmatpush.msra.mxu0 %v81
  %99 = vmatpush.msra.mxu0 %v80
  %100 = vmatpush.msra.mxu0 %v79
  %101 = vmatpush.msra.mxu0 %v78
  %102 = vmatpush.msra.mxu0 %v77
  %103 = vmatpush.msra.mxu0 %v76
  %104 = vmatmul.f32.gmra.mxu0 %v86
  %v105 = vpop.f32.mrf.mxu0
  %v106 = vadd.f32 0.0, %v105
  %107 = vdwg.mxu0
  %v108 = vld [vmem:[%s1 + $0x68] sm:$0x1]
  %v109 = vmul.f32 %v16, %v106
  %111 = vrot.lane.b32.xlu0 %v106, 96
  %v112 = vpop.permute.xlu0 %111
  %v114 = vadd.f32 %v109, %v112
  %v115 = vperm.slane %v108, 0
  %v116 = vadd.f32 %v114, %v115
  %v117 = vmul.f32 %v24, %v108
  %v118 = vperm.slane %v117, 0
  %120 = vrot.lane.b32.xlu0 %v118, 96
  %v121 = vpop.permute.xlu0 %120
  %v123 = vadd.f32 %v116, %v121
  %vm124 = vcmp.ge.f32.partialorder %v123, 0.0
  %v125 = vmul.f32 %v123, 0.2
  %v126 = vsel %vm124, %v123, %v125
  %v127 = vld [vmem:[%s1 + $0x70] sm:$0xff]
  %v128 = vld [vmem:[%s1 + $0x78] sm:$0xff]
  %v129 = vld [vmem:[%s1 + $0x80] sm:$0xff]
  %v130 = vld [vmem:[%s1 + $0x88] sm:$0xff]
  %v131 = vld [vmem:[%s1 + $0x90] sm:$0x1]
  %v132 = vperm.slane %v131, 0
  %v134 = vsel %vm29, %v126, 0
  %136 = vmatpush.msra.mxu0 0.0
  %137 = vmatpush.msra.mxu0 0.0
  %138 = vmatpush.msra.mxu0 0.0
  %139 = vmatpush.msra.mxu0 0.0
  %140 = vmatpush.msra.mxu0 0.0
  %141 = vmatpush.msra.mxu0 0.0
  %142 = vmatpush.msra.mxu0 0.0
  %143 = vmatpush.msra.mxu0 0.0
  %144 = vmatpush.msra.mxu0 0.0
  %145 = vmatpush.msra.mxu0 0.0
  %146 = vmatpush.msra.mxu0 0.0
  %147 = vmatpush.msra.mxu0 0.0
  %148 = vmatpush.msra.mxu0 %v130
  %149 = vmatpush.msra.mxu0 %v129
  %150 = vmatpush.msra.mxu0 %v128
  %151 = vmatpush.msra.mxu0 %v127
  %152 = vmatmul.f32.gmra.mxu0 %v134
  %v153 = vpop.f32.mrf.mxu0
  %v154 = vadd.f32 %v132, %v153
  %155 = vdwg.mxu0
  %156 = vst [vmem:[%s2] sm:$0x3] %v154
  // Predicated region
  $region10: #{proxy_graph_model_forward.1} parent=0 // pred_check
    _
  $region11: #{proxy_graph_model_forward.1} parent=0 // pred_check_branch
    %158 = sbr.rel (0) target = $region13
  $region12: #{proxy_graph_model_forward.1} parent=0 // pred_region
    _
  $region13: #{proxy_graph_model_forward.1} parent=0 // pred_fallthru
    _
  // Predicated region
  $region14: #{proxy_graph_model_forward.1} parent=0 // pred_check
    _
  $region15: #{proxy_graph_model_forward.1} parent=0 // pred_check_branch
    %160 = sbr.rel (0) target = $region17
  $region16: #{proxy_graph_model_forward.1} parent=0 // pred_region
    _
  $region17: #{proxy_graph_model_forward.1} parent=0 // pred_fallthru
    _

</llo_original>
